<compile_context>
chip_gen: v7x
topology: tpu7x:2x2x1
jax: 0.10.0
libtpu: 0.0.40
codegen_flags: <defaults>
</compile_context>

<pallas_src>
import functools

import numpy as np

import jax
import jax.numpy as jnp
from jax import lax
from jax.experimental import pallas as pl
from jax.experimental.pallas import tpu as pltpu


def _tap_geometry(KH, KW, ph, pw, sh, sw, Ho, Wo):
    """Static polyphase geometry of the KHxKW / stride-(sh,sw) depthwise conv.

    In the phase-major flat layout (lane = (p*sw+q)*Ho*Wo + oh*Wo + ow, where
    the original pixel is (h, w) = (oh*sh + p, ow*sw + q)), the input pixel
    read by output (oh, ow) for tap (kh, kw) lives at flat index
        start + oh*Wo + ow,   start = (p*sw+q)*Ho*Wo + roff*Wo + coff
    i.e. every tap is one contiguous lane slice of the stage-1 activation plus
    a static 0/1 border mask.  Stride (1,1) is the trivial single-phase case.
    """
    n_out = Ho * Wo
    n_in = (Ho * sh) * (Wo * sw)
    taps = []
    for kh in range(KH):
        for kw in range(KW):
            dh, dw = kh - ph, kw - pw
            p, q = dh % sh, dw % sw                  # phase of this tap
            roff, coff = (dh - p) // sh, (dw - q) // sw
            start = ((p * sw + q) * n_out + roff * Wo + coff) % n_in
            taps.append((kh * KW + kw, start, roff, coff))
    return taps


def _depth_wise_kernel(x_ref, mask_ref, w1_ref, bn1s_ref, bn1b_ref, a1_ref,
                       wdw_ref, bn2s_ref, bn2b_ref, a2_ref,
                       w3_ref, bn3s_ref, bn3b_ref,
                       out_ref, ybuf,
                       *, H, W, KH, KW, sh, sw, ph, pw, residual, mxu_dtype):
    n_in = H * W
    Ho, Wo = H // sh, W // sw
    n_out = Ho * Wo
    Cin = x_ref.shape[1]

    xb = x_ref[0]                                    # (Cin, H*W), lane-dense

    # ---- stage 1: 1x1 conv (Cin -> G) + BN + PReLU -------------------------
    w1 = w1_ref[...]                                 # (G, Cin)
    if Cin >= 32:
        y = jnp.dot(w1.astype(mxu_dtype), xb.astype(mxu_dtype),
                    preferred_element_type=jnp.float32)
    else:
        # contraction far too small to fill the MXU: Cin lane-dense VPU
        # rank-1 FMAs instead of a ~3% utilised MXU pass.
        y = w1[:, 0:1] * xb[0:1, :]
        for c in range(1, Cin):
            y = y + w1[:, c:c + 1] * xb[c:c + 1, :]
    y = y * bn1s_ref[...] + bn1b_ref[...]
    y = jnp.where(y > 0, y, y * a1_ref[...])         # (G, H*W)

    # ---- stage 2: KHxKW depthwise conv, stride (sh, sw), 'same' padding ----
    # y is in phase-major polyphase order (see _tap_geometry): each tap is a
    # contiguous static lane slice of ybuf * per-channel tap weight * a
    # precomputed 0/1 border mask, accumulated lane-dense directly at the
    # decimated resolution (G, Ho*Wo).
    taps = _tap_geometry(KH, KW, ph, pw, sh, sw, Ho, Wo)
    ybuf[:, pl.ds(0, n_in)] = y                      # one dense unmasked store
    if any(start + n_out > n_in for _, start, _, _ in taps):
        # only stride (1,1) taps with negative shifts read past the first copy
        ybuf[:, pl.ds(n_in, n_in)] = y

    w_all = wdw_ref[...]                             # (G, KH*KW)
    masks = mask_ref[...]                            # (KH*KW, n_out), 0/1 f32
    acc = None
    for t, start, roff, coff in taps:
        term = ybuf[:, pl.ds(start, n_out)] * w_all[:, t:t + 1]
        if roff != 0 or coff != 0:
            # every lane of ybuf holds finite y data, so a multiplicative
            # 0/1 mask is safe (no NaN * 0) and costs a single VPU mul.
            term = term * masks[t:t + 1, :]
        acc = term if acc is None else acc + term    # (G, Ho*Wo)

    a2d = acc * bn2s_ref[...] + bn2b_ref[...]
    a2d = jnp.where(a2d > 0, a2d, a2d * a2_ref[...])

    # ---- stage 3: 1x1 projection (G -> Cout) + BN (+ residual) -------------
    z = jnp.dot(w3_ref[...].astype(mxu_dtype), a2d.astype(mxu_dtype),
                preferred_element_type=jnp.float32)  # (Cout, Ho*Wo)
    z = z * bn3s_ref[...] + bn3b_ref[...]
    if residual:                                     # stride (1,1) only
        z = z + xb
    out_ref[0] = z.astype(out_ref.dtype)             # one lane-dense store


def depth_wise_forward(x_nchw, params, *, kernel=(3, 3), stride=(2, 2),
                       padding=(1, 1), residual=False, mxu_dtype=jnp.float32):
    B, Cin, H, W = x_nchw.shape
    G = params["w1"].shape[0]
    Cout = params["w3"].shape[0]
    KH, KW = kernel
    sh, sw = stride
    ph, pw = padding

    # TODO(synk): general (non-'same') padding or strides that do not divide
    # the spatial dims would need the explicit padded-canvas fallback path.
    assert KH % 2 == 1 and KW % 2 == 1 and 2 * ph == KH - 1 and 2 * pw == KW - 1, \
        "depthwise stage supports odd kernels with 'same' padding"
    assert H % sh == 0 and W % sw == 0, "stride must divide the spatial dims"
    Ho, Wo = H // sh, W // sw
    n_in, n_out = H * W, Ho * Wo
    if residual:
        assert Cout == Cin and sh == 1 and sw == 1, \
            "residual=True requires stride=(1,1) and in_c == out_c"

    x = x_nchw.astype(jnp.float32)
    if sh == 1 and sw == 1:
        # NCHW is already channel-major: free metadata reshape, no transpose.
        x_flat = x.reshape(B, Cin, n_in)
    else:
        # phase-major polyphase permutation of the *input* (the smallest
        # tensor in the block) so the kernel emits the strided output directly
        # at decimated resolution -- no full-width compute, no wrapper slice.
        x_flat = (x.reshape(B, Cin, Ho, sh, Wo, sw)
                   .transpose(0, 1, 3, 5, 2, 4)
                   .reshape(B, Cin, n_in))

    # Static 0/1 border masks per tap (host-side numpy -> baked constant).
    oh = np.arange(Ho).reshape(Ho, 1)
    ow = np.arange(Wo).reshape(1, Wo)
    mask_rows = []
    for _, _, roff, coff in _tap_geometry(KH, KW, ph, pw, sh, sw, Ho, Wo):
        ok = ((oh + roff >= 0) & (oh + roff < Ho) &
              (ow + coff >= 0) & (ow + coff < Wo))
        mask_rows.append(ok.reshape(-1))
    tap_mask = jnp.asarray(np.stack(mask_rows), dtype=jnp.float32)  # (KH*KW, n_out)

    kern = functools.partial(
        _depth_wise_kernel, H=H, W=W, KH=KH, KW=KW, sh=sh, sw=sw, ph=ph, pw=pw,
        residual=residual, mxu_dtype=mxu_dtype)

    param_names = ("w1", "bn1_s", "bn1_b", "a1", "wdw", "bn2_s", "bn2_b", "a2",
                   "w3", "bn3_s", "bn3_b")
    param_arrays = [params[k] for k in param_names]

    in_specs = [pl.BlockSpec((1, Cin, n_in), lambda b: (b, 0, 0)),
                pl.BlockSpec(tap_mask.shape, lambda b: (0, 0))]
    in_specs += [pl.BlockSpec(a.shape, lambda b: (0, 0)) for a in param_arrays]

    # TODO(synk): for real MixedFeatureNet sizes (H=W up to 112, G up to 512)
    # add a spatial "parallel" grid axis over row blocks of Ho and set
    # pltpu.CompilerParams(vmem_limit_bytes=...) so the (G, 2*H*W) scratch and
    # the double-buffered blocks also fit v7x's 64 MiB VMEM.
    out_flat = pl.pallas_call(
        kern,
        out_shape=jax.ShapeDtypeStruct((B, Cout, n_out), jnp.float32),
        grid=(B,),
        in_specs=in_specs,
        out_specs=pl.BlockSpec((1, Cout, n_out), lambda b: (b, 0, 0)),
        scratch_shapes=[pltpu.VMEM((G, 2 * n_in), jnp.float32)],
        compiler_params=pltpu.CompilerParams(
            dimension_semantics=("parallel",)),   # B independent steps (2 TCs on v7x)
    )(x_flat, tap_mask, *param_arrays)

    # free reshape: the kernel already produced the decimated raster output.
    return out_flat.reshape(B, Cout, Ho, Wo)


def init_depth_wise_params(key, in_c, out_c, groups, kernel=(3, 3)):
    """Deterministic synthetic parameters (torch layouts -> kernel layouts)."""
    eps = 1e-5
    KH, KW = kernel
    keys = jax.random.split(key, 17)

    def bn_fold(k0, k1, k2, k3, c):
        gamma = 1.0 + 0.1 * jax.random.normal(k0, (c,), jnp.float32)
        beta = 0.1 * jax.random.normal(k1, (c,), jnp.float32)
        mean = 0.1 * jax.random.normal(k2, (c,), jnp.float32)
        var = jnp.abs(jax.random.normal(k3, (c,), jnp.float32)) + 0.5
        scale = gamma / jnp.sqrt(var + eps)
        shift = beta - mean * scale
        return scale.reshape(c, 1), shift.reshape(c, 1)

    # torch Conv2d weights: (out, in/groups, kh, kw)
    w1_t = 0.2 * jax.random.normal(keys[0], (groups, in_c, 1, 1), jnp.float32)
    wdw_t = 0.2 * jax.random.normal(keys[1], (groups, 1, KH, KW), jnp.float32)
    w3_t = 0.2 * jax.random.normal(keys[2], (out_c, groups, 1, 1), jnp.float32)

    bn1_s, bn1_b = bn_fold(keys[3], keys[4], keys[5], keys[6], groups)
    bn2_s, bn2_b = bn_fold(keys[7], keys[8], keys[9], keys[10], groups)
    bn3_s, bn3_b = bn_fold(keys[11], keys[12], keys[13], keys[14], out_c)

    a1 = (0.25 + 0.05 * jax.random.normal(keys[15], (groups,), jnp.float32)).reshape(groups, 1)
    a2 = (0.25 + 0.05 * jax.random.normal(keys[16], (groups,), jnp.float32)).reshape(groups, 1)

    # kernel layouts: channel-major weights, per-channel params as (C, 1)
    # columns, depthwise taps packed into a single (G, KH*KW) tile
    # (tap index t = kh*KW + kw).
    return {
        "w1": w1_t[:, :, 0, 0],                        # (G, Cin)
        "wdw": wdw_t[:, 0, :, :].reshape(groups, KH * KW),  # (G, KH*KW)
        "w3": w3_t[:, :, 0, 0],                        # (Cout, G)
        "bn1_s": bn1_s, "bn1_b": bn1_b, "a1": a1,
        "bn2_s": bn2_s, "bn2_b": bn2_b, "a2": a2,
        "bn3_s": bn3_s, "bn3_b": bn3_b,
    }


def depth_wise_reference(x_nchw, params, *, kernel=(3, 3), stride=(2, 2),
                         padding=(1, 1), residual=False):
    """Pure-JAX reference (lax conv) for correctness checking."""
    KH, KW = kernel
    G = params["w1"].shape[0]
    dn = ("NHWC", "HWIO", "NHWC")
    x = jnp.transpose(x_nchw, (0, 2, 3, 1)).astype(jnp.float32)

    w1_hwio = jnp.transpose(params["w1"], (1, 0))[None, None]      # (1,1,Cin,G)
    y = lax.conv_general_dilated(x, w1_hwio, (1, 1), "VALID",
                                 dimension_numbers=dn)
    y = y * params["bn1_s"][:, 0] + params["bn1_b"][:, 0]
    y = jnp.where(y > 0, y, y * params["a1"][:, 0])

    wdw_hwio = jnp.transpose(params["wdw"], (1, 0)).reshape(KH, KW, 1, G)
    y = lax.conv_general_dilated(
        y, wdw_hwio, stride,
        [(padding[0], padding[0]), (padding[1], padding[1])],
        feature_group_count=G, dimension_numbers=dn)
    y = y * params["bn2_s"][:, 0] + params["bn2_b"][:, 0]
    y = jnp.where(y > 0, y, y * params["a2"][:, 0])

    w3_hwio = jnp.transpose(params["w3"], (1, 0))[None, None]      # (1,1,G,Cout)
    z = lax.conv_general_dilated(y, w3_hwio, (1, 1), "VALID",
                                 dimension_numbers=dn)
    z = z * params["bn3_s"][:, 0] + params["bn3_b"][:, 0]
    out = jnp.transpose(z, (0, 3, 1, 2))
    if residual:
        out = out + x_nchw
    return out


if __name__ == "__main__":
    key = jax.random.PRNGKey(0)
    kx, kp, kp2 = jax.random.split(key, 3)

    # --- config 1: Depth_Wise(in_c=4, out_c=8, groups=8), default stride (2,2)
    B, in_c, H, W = 2, 4, 16, 16
    out_c, groups = 8, 8
    x = jax.random.normal(kx, (B, in_c, H, W), jnp.float32)
    params = init_depth_wise_params(kp, in_c, out_c, groups)

    out = depth_wise_forward(x, params)            # kernel=(3,3), stride=(2,2), pad=(1,1)
    out = jax.block_until_ready(out)
    ref = depth_wise_reference(x, params)
    assert out.shape == (B, out_c, H // 2, W // 2), out.shape
    assert jnp.allclose(out, ref, rtol=1e-4, atol=1e-4), \
        float(jnp.max(jnp.abs(out - ref)))

    # --- config 2: residual branch: Depth_Wise(8, 8, residual=True,
    #     stride=(1,1), groups=16)
    in_c2 = out_c2 = 8
    groups2 = 16
    x2 = jax.random.normal(jax.random.PRNGKey(1), (B, in_c2, H, W), jnp.float32)
    params2 = init_depth_wise_params(kp2, in_c2, out_c2, groups2)

    out2 = depth_wise_forward(x2, params2, stride=(1, 1), residual=True)
    out2 = jax.block_until_ready(out2)
    ref2 = depth_wise_reference(x2, params2, stride=(1, 1), residual=True)
    assert out2.shape == (B, out_c2, H, W), out2.shape
    assert jnp.allclose(out2, ref2, rtol=1e-4, atol=1e-4), \
        float(jnp.max(jnp.abs(out2 - ref2)))

    print("KERNEL_OK")
</pallas_src>

<mosaic_0001>
module attributes {stable_mosaic.version = 11 : i64} {
  func.func @_depth_wise_kernel(%arg0: i32, %arg1: memref<1x4x256xf32, #tpu.memory_space<vmem>>, %arg2: memref<9x64xf32, #tpu.memory_space<vmem>>, %arg3: memref<8x4xf32, #tpu.memory_space<vmem>>, %arg4: memref<8x1xf32, #tpu.memory_space<vmem>>, %arg5: memref<8x1xf32, #tpu.memory_space<vmem>>, %arg6: memref<8x1xf32, #tpu.memory_space<vmem>>, %arg7: memref<8x9xf32, #tpu.memory_space<vmem>>, %arg8: memref<8x1xf32, #tpu.memory_space<vmem>>, %arg9: memref<8x1xf32, #tpu.memory_space<vmem>>, %arg10: memref<8x1xf32, #tpu.memory_space<vmem>>, %arg11: memref<8x8xf32, #tpu.memory_space<vmem>>, %arg12: memref<8x1xf32, #tpu.memory_space<vmem>>, %arg13: memref<8x1xf32, #tpu.memory_space<vmem>>, %arg14: memref<1x8x64xf32, #tpu.memory_space<vmem>>, %arg15: memref<8x512xf32, #tpu.memory_space<vmem>>) attributes {dimension_semantics = [#tpu.dimension_semantics<parallel>], iteration_bounds = array<i64: 2>, scalar_prefetch = 0 : i64, scratch_operands = 1 : i64, tpu.core_type = #tpu.core_type<tc>, window_params = [{transform_indices = @transform_0, window_bounds = array<i64: 1, 4, 256>}, {pipeline_mode = #tpu.pipeline_mode<synchronous>, transform_indices = @transform_1, window_bounds = array<i64: 9, 64>}, {pipeline_mode = #tpu.pipeline_mode<synchronous>, transform_indices = @transform_2, window_bounds = array<i64: 8, 4>}, {pipeline_mode = #tpu.pipeline_mode<synchronous>, transform_indices = @transform_3, window_bounds = array<i64: 8, 1>}, {pipeline_mode = #tpu.pipeline_mode<synchronous>, transform_indices = @transform_4, window_bounds = array<i64: 8, 1>}, {pipeline_mode = #tpu.pipeline_mode<synchronous>, transform_indices = @transform_5, window_bounds = array<i64: 8, 1>}, {pipeline_mode = #tpu.pipeline_mode<synchronous>, transform_indices = @transform_6, window_bounds = array<i64: 8, 9>}, {pipeline_mode = #tpu.pipeline_mode<synchronous>, transform_indices = @transform_7, window_bounds = array<i64: 8, 1>}, {pipeline_mode = #tpu.pipeline_mode<synchronous>, transform_indices = @transform_8, window_bounds = array<i64: 8, 1>}, {pipeline_mode = #tpu.pipeline_mode<synchronous>, transform_indices = @transform_9, window_bounds = array<i64: 8, 1>}, {pipeline_mode = #tpu.pipeline_mode<synchronous>, transform_indices = @transform_10, window_bounds = array<i64: 8, 8>}, {pipeline_mode = #tpu.pipeline_mode<synchronous>, transform_indices = @transform_11, window_bounds = array<i64: 8, 1>}, {pipeline_mode = #tpu.pipeline_mode<synchronous>, transform_indices = @transform_12, window_bounds = array<i64: 8, 1>}, {transform_indices = @transform_13, window_bounds = array<i64: 1, 8, 64>}]} {
    %c0 = arith.constant 0 : index
    %c0_0 = arith.constant 0 : index
    %c0_1 = arith.constant 0 : index
    %0 = vector.load %arg1[%c0, %c0_0, %c0_1] : memref<1x4x256xf32, #tpu.memory_space<vmem>>, vector<1x4x256xf32>
    %1 = vector.shape_cast %0 : vector<1x4x256xf32> to vector<4x256xf32>
    %c0_2 = arith.constant 0 : index
    %c0_3 = arith.constant 0 : index
    %2 = vector.load %arg3[%c0_2, %c0_3] : memref<8x4xf32, #tpu.memory_space<vmem>>, vector<8x4xf32>
    %3 = vector.extract_strided_slice %2 {offsets = [0, 0], sizes = [8, 1], strides = [1, 1]} : vector<8x4xf32> to vector<8x1xf32>
    %4 = vector.extract_strided_slice %1 {offsets = [0, 0], sizes = [1, 256], strides = [1, 1]} : vector<4x256xf32> to vector<1x256xf32>
    %5 = vector.broadcast %3 : vector<8x1xf32> to vector<8x256xf32>
    %6 = vector.broadcast %4 : vector<1x256xf32> to vector<8x256xf32>
    %7 = arith.mulf %5, %6 : vector<8x256xf32>
    %8 = vector.extract_strided_slice %2 {offsets = [0, 1], sizes = [8, 1], strides = [1, 1]} : vector<8x4xf32> to vector<8x1xf32>
    %9 = vector.extract_strided_slice %1 {offsets = [1, 0], sizes = [1, 256], strides = [1, 1]} : vector<4x256xf32> to vector<1x256xf32>
    %10 = vector.broadcast %8 : vector<8x1xf32> to vector<8x256xf32>
    %11 = vector.broadcast %9 : vector<1x256xf32> to vector<8x256xf32>
    %12 = arith.mulf %10, %11 : vector<8x256xf32>
    %13 = arith.addf %7, %12 : vector<8x256xf32>
    %14 = vector.extract_strided_slice %2 {offsets = [0, 2], sizes = [8, 1], strides = [1, 1]} : vector<8x4xf32> to vector<8x1xf32>
    %15 = vector.extract_strided_slice %1 {offsets = [2, 0], sizes = [1, 256], strides = [1, 1]} : vector<4x256xf32> to vector<1x256xf32>
    %16 = vector.broadcast %14 : vector<8x1xf32> to vector<8x256xf32>
    %17 = vector.broadcast %15 : vector<1x256xf32> to vector<8x256xf32>
    %18 = arith.mulf %16, %17 : vector<8x256xf32>
    %19 = arith.addf %13, %18 : vector<8x256xf32>
    %20 = vector.extract_strided_slice %2 {offsets = [0, 3], sizes = [8, 1], strides = [1, 1]} : vector<8x4xf32> to vector<8x1xf32>
    %21 = vector.extract_strided_slice %1 {offsets = [3, 0], sizes = [1, 256], strides = [1, 1]} : vector<4x256xf32> to vector<1x256xf32>
    %22 = vector.broadcast %20 : vector<8x1xf32> to vector<8x256xf32>
    %23 = vector.broadcast %21 : vector<1x256xf32> to vector<8x256xf32>
    %24 = arith.mulf %22, %23 : vector<8x256xf32>
    %25 = arith.addf %19, %24 : vector<8x256xf32>
    %c0_4 = arith.constant 0 : index
    %c0_5 = arith.constant 0 : index
    %26 = vector.load %arg4[%c0_4, %c0_5] : memref<8x1xf32, #tpu.memory_space<vmem>>, vector<8x1xf32>
    %27 = vector.broadcast %26 : vector<8x1xf32> to vector<8x256xf32>
    %28 = arith.mulf %25, %27 : vector<8x256xf32>
    %c0_6 = arith.constant 0 : index
    %c0_7 = arith.constant 0 : index
    %29 = vector.load %arg5[%c0_6, %c0_7] : memref<8x1xf32, #tpu.memory_space<vmem>>, vector<8x1xf32>
    %30 = vector.broadcast %29 : vector<8x1xf32> to vector<8x256xf32>
    %31 = arith.addf %28, %30 : vector<8x256xf32>
    %cst = arith.constant 0.000000e+00 : f32
    %32 = vector.broadcast %cst : f32 to vector<8x256xf32>
    %33 = arith.cmpf ogt, %31, %32 : vector<8x256xf32>
    %c0_8 = arith.constant 0 : index
    %c0_9 = arith.constant 0 : index
    %34 = vector.load %arg6[%c0_8, %c0_9] : memref<8x1xf32, #tpu.memory_space<vmem>>, vector<8x1xf32>
    %35 = vector.broadcast %34 : vector<8x1xf32> to vector<8x256xf32>
    %36 = arith.mulf %31, %35 : vector<8x256xf32>
    %37 = arith.select %33, %31, %36 : vector<8x256xi1>, vector<8x256xf32>
    %c0_10 = arith.constant 0 : index
    %c0_11 = arith.constant 0 : index
    %38 = vector.load %arg15[%c0_10, %c0_11] : memref<8x512xf32, #tpu.memory_space<vmem>>, vector<8x256xf32>
    tpu.vector_store %arg15[%c0_10, %c0_11], %37 {strides = array<i32>} : memref<8x512xf32, #tpu.memory_space<vmem>>, vector<8x256xf32>,
    %c0_12 = arith.constant 0 : index
    %c0_13 = arith.constant 0 : index
    %39 = vector.load %arg7[%c0_12, %c0_13] : memref<8x9xf32, #tpu.memory_space<vmem>>, vector<8x9xf32>
    %c0_14 = arith.constant 0 : index
    %c0_15 = arith.constant 0 : index
    %40 = vector.load %arg2[%c0_14, %c0_15] : memref<9x64xf32, #tpu.memory_space<vmem>>, vector<9x64xf32>
    %c0_16 = arith.constant 0 : index
    %c183 = arith.constant 183 : index
    %41 = vector.load %arg15[%c0_16, %c183] : memref<8x512xf32, #tpu.memory_space<vmem>>, vector<8x64xf32>
    %42 = vector.extract_strided_slice %39 {offsets = [0, 0], sizes = [8, 1], strides = [1, 1]} : vector<8x9xf32> to vector<8x1xf32>
    %43 = vector.broadcast %42 : vector<8x1xf32> to vector<8x64xf32>
    %44 = arith.mulf %41, %43 : vector<8x64xf32>
    %45 = vector.extract_strided_slice %40 {offsets = [0, 0], sizes = [1, 64], strides = [1, 1]} : vector<9x64xf32> to vector<1x64xf32>
    %46 = vector.broadcast %45 : vector<1x64xf32> to vector<8x64xf32>
    %47 = arith.mulf %44, %46 : vector<8x64xf32>
    %c0_17 = arith.constant 0 : index
    %c120 = arith.constant 120 : index
    %48 = vector.load %arg15[%c0_17, %c120] : memref<8x512xf32, #tpu.memory_space<vmem>>, vector<8x64xf32>
    %49 = vector.extract_strided_slice %39 {offsets = [0, 1], sizes = [8, 1], strides = [1, 1]} : vector<8x9xf32> to vector<8x1xf32>
    %50 = vector.broadcast %49 : vector<8x1xf32> to vector<8x64xf32>
    %51 = arith.mulf %48, %50 : vector<8x64xf32>
    %52 = vector.extract_strided_slice %40 {offsets = [1, 0], sizes = [1, 64], strides = [1, 1]} : vector<9x64xf32> to vector<1x64xf32>
    %53 = vector.broadcast %52 : vector<1x64xf32> to vector<8x64xf32>
    %54 = arith.mulf %51, %53 : vector<8x64xf32>
    %55 = arith.addf %47, %54 : vector<8x64xf32>
    %c0_18 = arith.constant 0 : index
    %c184 = arith.constant 184 : index
    %56 = vector.load %arg15[%c0_18, %c184] : memref<8x512xf32, #tpu.memory_space<vmem>>, vector<8x64xf32>
    %57 = vector.extract_strided_slice %39 {offsets = [0, 2], sizes = [8, 1], strides = [1, 1]} : vector<8x9xf32> to vector<8x1xf32>
    %58 = vector.broadcast %57 : vector<8x1xf32> to vector<8x64xf32>
    %59 = arith.mulf %56, %58 : vector<8x64xf32>
    %60 = vector.extract_strided_slice %40 {offsets = [2, 0], sizes = [1, 64], strides = [1, 1]} : vector<9x64xf32> to vector<1x64xf32>
    %61 = vector.broadcast %60 : vector<1x64xf32> to vector<8x64xf32>
    %62 = arith.mulf %59, %61 : vector<8x64xf32>
    %63 = arith.addf %55, %62 : vector<8x64xf32>
    %c0_19 = arith.constant 0 : index
    %c63 = arith.constant 63 : index
    %64 = vector.load %arg15[%c0_19, %c63] : memref<8x512xf32, #tpu.memory_space<vmem>>, vector<8x64xf32>
    %65 = vector.extract_strided_slice %39 {offsets = [0, 3], sizes = [8, 1], strides = [1, 1]} : vector<8x9xf32> to vector<8x1xf32>
    %66 = vector.broadcast %65 : vector<8x1xf32> to vector<8x64xf32>
    %67 = arith.mulf %64, %66 : vector<8x64xf32>
    %68 = vector.extract_strided_slice %40 {offsets = [3, 0], sizes = [1, 64], strides = [1, 1]} : vector<9x64xf32> to vector<1x64xf32>
    %69 = vector.broadcast %68 : vector<1x64xf32> to vector<8x64xf32>
    %70 = arith.mulf %67, %69 : vector<8x64xf32>
    %71 = arith.addf %63, %70 : vector<8x64xf32>
    %c0_20 = arith.constant 0 : index
    %c0_21 = arith.constant 0 : index
    %72 = vector.load %arg15[%c0_20, %c0_21] : memref<8x512xf32, #tpu.memory_space<vmem>>, vector<8x64xf32>
    %73 = vector.extract_strided_slice %39 {offsets = [0, 4], sizes = [8, 1], strides = [1, 1]} : vector<8x9xf32> to vector<8x1xf32>
    %74 = vector.broadcast %73 : vector<8x1xf32> to vector<8x64xf32>
    %75 = arith.mulf %72, %74 : vector<8x64xf32>
    %76 = arith.addf %71, %75 : vector<8x64xf32>
    %c0_22 = arith.constant 0 : index
    %c64 = arith.constant 64 : index
    %77 = vector.load %arg15[%c0_22, %c64] : memref<8x512xf32, #tpu.memory_space<vmem>>, vector<8x64xf32>
    %78 = vector.extract_strided_slice %39 {offsets = [0, 5], sizes = [8, 1], strides = [1, 1]} : vector<8x9xf32> to vector<8x1xf32>
    %79 = vector.broadcast %78 : vector<8x1xf32> to vector<8x64xf32>
    %80 = arith.mulf %77, %79 : vector<8x64xf32>
    %81 = arith.addf %76, %80 : vector<8x64xf32>
    %c0_23 = arith.constant 0 : index
    %c191 = arith.constant 191 : index
    %82 = vector.load %arg15[%c0_23, %c191] : memref<8x512xf32, #tpu.memory_space<vmem>>, vector<8x64xf32>
    %83 = vector.extract_strided_slice %39 {offsets = [0, 6], sizes = [8, 1], strides = [1, 1]} : vector<8x9xf32> to vector<8x1xf32>
    %84 = vector.broadcast %83 : vector<8x1xf32> to vector<8x64xf32>
    %85 = arith.mulf %82, %84 : vector<8x64xf32>
    %86 = vector.extract_strided_slice %40 {offsets = [6, 0], sizes = [1, 64], strides = [1, 1]} : vector<9x64xf32> to vector<1x64xf32>
    %87 = vector.broadcast %86 : vector<1x64xf32> to vector<8x64xf32>
    %88 = arith.mulf %85, %87 : vector<8x64xf32>
    %89 = arith.addf %81, %88 : vector<8x64xf32>
    %c0_24 = arith.constant 0 : index
    %c128 = arith.constant 128 : index
    %90 = vector.load %arg15[%c0_24, %c128] : memref<8x512xf32, #tpu.memory_space<vmem>>, vector<8x64xf32>
    %91 = vector.extract_strided_slice %39 {offsets = [0, 7], sizes = [8, 1], strides = [1, 1]} : vector<8x9xf32> to vector<8x1xf32>
    %92 = vector.broadcast %91 : vector<8x1xf32> to vector<8x64xf32>
    %93 = arith.mulf %90, %92 : vector<8x64xf32>
    %94 = arith.addf %89, %93 : vector<8x64xf32>
    %c0_25 = arith.constant 0 : index
    %c192 = arith.constant 192 : index
    %95 = vector.load %arg15[%c0_25, %c192] : memref<8x512xf32, #tpu.memory_space<vmem>>, vector<8x64xf32>
    %96 = vector.extract_strided_slice %39 {offsets = [0, 8], sizes = [8, 1], strides = [1, 1]} : vector<8x9xf32> to vector<8x1xf32>
    %97 = vector.broadcast %96 : vector<8x1xf32> to vector<8x64xf32>
    %98 = arith.mulf %95, %97 : vector<8x64xf32>
    %99 = arith.addf %94, %98 : vector<8x64xf32>
    %c0_26 = arith.constant 0 : index
    %c0_27 = arith.constant 0 : index
    %100 = vector.load %arg8[%c0_26, %c0_27] : memref<8x1xf32, #tpu.memory_space<vmem>>, vector<8x1xf32>
    %101 = vector.broadcast %100 : vector<8x1xf32> to vector<8x64xf32>
    %102 = arith.mulf %99, %101 : vector<8x64xf32>
    %c0_28 = arith.constant 0 : index
    %c0_29 = arith.constant 0 : index
    %103 = vector.load %arg9[%c0_28, %c0_29] : memref<8x1xf32, #tpu.memory_space<vmem>>, vector<8x1xf32>
    %104 = vector.broadcast %103 : vector<8x1xf32> to vector<8x64xf32>
    %105 = arith.addf %102, %104 : vector<8x64xf32>
    %cst_30 = arith.constant 0.000000e+00 : f32
    %106 = vector.broadcast %cst_30 : f32 to vector<8x64xf32>
    %107 = arith.cmpf ogt, %105, %106 : vector<8x64xf32>
    %c0_31 = arith.constant 0 : index
    %c0_32 = arith.constant 0 : index
    %108 = vector.load %arg10[%c0_31, %c0_32] : memref<8x1xf32, #tpu.memory_space<vmem>>, vector<8x1xf32>
    %109 = vector.broadcast %108 : vector<8x1xf32> to vector<8x64xf32>
    %110 = arith.mulf %105, %109 : vector<8x64xf32>
    %111 = arith.select %107, %105, %110 : vector<8x64xi1>, vector<8x64xf32>
    %c0_33 = arith.constant 0 : index
    %c0_34 = arith.constant 0 : index
    %112 = vector.load %arg11[%c0_33, %c0_34] : memref<8x8xf32, #tpu.memory_space<vmem>>, vector<8x8xf32>
    %cst_35 = arith.constant dense<0.000000e+00> : vector<8x64xf32>
    %113 = tpu.matmul %112, %111, %cst_35 {dimension_numbers = #tpu.dot_dimension_numbers<[1], [0], [0], [1], [0, 0, 1, 1], [], []>} : vector<8x8xf32>, vector<8x64xf32>, vector<8x64xf32> -> vector<8x64xf32>
    %c0_36 = arith.constant 0 : index
    %c0_37 = arith.constant 0 : index
    %114 = vector.load %arg12[%c0_36, %c0_37] : memref<8x1xf32, #tpu.memory_space<vmem>>, vector<8x1xf32>
    %115 = vector.broadcast %114 : vector<8x1xf32> to vector<8x64xf32>
    %116 = arith.mulf %113, %115 : vector<8x64xf32>
    %c0_38 = arith.constant 0 : index
    %c0_39 = arith.constant 0 : index
    %117 = vector.load %arg13[%c0_38, %c0_39] : memref<8x1xf32, #tpu.memory_space<vmem>>, vector<8x1xf32>
    %118 = vector.broadcast %117 : vector<8x1xf32> to vector<8x64xf32>
    %119 = arith.addf %116, %118 : vector<8x64xf32>
    %c0_40 = arith.constant 0 : index
    %c0_41 = arith.constant 0 : index
    %c0_42 = arith.constant 0 : index
    %120 = vector.load %arg14[%c0_40, %c0_41, %c0_42] : memref<1x8x64xf32, #tpu.memory_space<vmem>>, vector<1x8x64xf32>
    %121 = vector.shape_cast %120 : vector<1x8x64xf32> to vector<8x64xf32>
    %122 = vector.shape_cast %119 : vector<8x64xf32> to vector<1x8x64xf32>
    tpu.vector_store %arg14[%c0_40, %c0_41, %c0_42], %122 {strides = array<i32>} : memref<1x8x64xf32, #tpu.memory_space<vmem>>, vector<1x8x64xf32>,
    return
  }
  func.func @transform_0(%arg0: i32) -> (i32, i32, i32) {
    %c0_i32 = arith.constant 0 : i32
    %c0_i32_0 = arith.constant 0 : i32
    %c0_i32_1 = arith.constant 0 : i32
    return %arg0, %c0_i32, %c0_i32_0 : i32, i32, i32
  }
  func.func @transform_1(%arg0: i32) -> (i32, i32) {
    %c0_i32 = arith.constant 0 : i32
    %c0_i32_0 = arith.constant 0 : i32
    %c0_i32_1 = arith.constant 0 : i32
    return %c0_i32, %c0_i32_0 : i32, i32
  }
  func.func @transform_2(%arg0: i32) -> (i32, i32) {
    %c0_i32 = arith.constant 0 : i32
    %c0_i32_0 = arith.constant 0 : i32
    %c0_i32_1 = arith.constant 0 : i32
    return %c0_i32, %c0_i32_0 : i32, i32
  }
  func.func @transform_3(%arg0: i32) -> (i32, i32) {
    %c0_i32 = arith.constant 0 : i32
    %c0_i32_0 = arith.constant 0 : i32
    %c0_i32_1 = arith.constant 0 : i32
    return %c0_i32, %c0_i32_0 : i32, i32
  }
  func.func @transform_4(%arg0: i32) -> (i32, i32) {
    %c0_i32 = arith.constant 0 : i32
    %c0_i32_0 = arith.constant 0 : i32
    %c0_i32_1 = arith.constant 0 : i32
    return %c0_i32, %c0_i32_0 : i32, i32
  }
  func.func @transform_5(%arg0: i32) -> (i32, i32) {
    %c0_i32 = arith.constant 0 : i32
    %c0_i32_0 = arith.constant 0 : i32
    %c0_i32_1 = arith.constant 0 : i32
    return %c0_i32, %c0_i32_0 : i32, i32
  }
  func.func @transform_6(%arg0: i32) -> (i32, i32) {
    %c0_i32 = arith.constant 0 : i32
    %c0_i32_0 = arith.constant 0 : i32
    %c0_i32_1 = arith.constant 0 : i32
    return %c0_i32, %c0_i32_0 : i32, i32
  }
  func.func @transform_7(%arg0: i32) -> (i32, i32) {
    %c0_i32 = arith.constant 0 : i32
    %c0_i32_0 = arith.constant 0 : i32
    %c0_i32_1 = arith.constant 0 : i32
    return %c0_i32, %c0_i32_0 : i32, i32
  }
  func.func @transform_8(%arg0: i32) -> (i32, i32) {
    %c0_i32 = arith.constant 0 : i32
    %c0_i32_0 = arith.constant 0 : i32
    %c0_i32_1 = arith.constant 0 : i32
    return %c0_i32, %c0_i32_0 : i32, i32
  }
  func.func @transform_9(%arg0: i32) -> (i32, i32) {
    %c0_i32 = arith.constant 0 : i32
    %c0_i32_0 = arith.constant 0 : i32
    %c0_i32_1 = arith.constant 0 : i32
    return %c0_i32, %c0_i32_0 : i32, i32
  }
  func.func @transform_10(%arg0: i32) -> (i32, i32) {
    %c0_i32 = arith.constant 0 : i32
    %c0_i32_0 = arith.constant 0 : i32
    %c0_i32_1 = arith.constant 0 : i32
    return %c0_i32, %c0_i32_0 : i32, i32
  }
  func.func @transform_11(%arg0: i32) -> (i32, i32) {
    %c0_i32 = arith.constant 0 : i32
    %c0_i32_0 = arith.constant 0 : i32
    %c0_i32_1 = arith.constant 0 : i32
    return %c0_i32, %c0_i32_0 : i32, i32
  }
  func.func @transform_12(%arg0: i32) -> (i32, i32) {
    %c0_i32 = arith.constant 0 : i32
    %c0_i32_0 = arith.constant 0 : i32
    %c0_i32_1 = arith.constant 0 : i32
    return %c0_i32, %c0_i32_0 : i32, i32
  }
  func.func @transform_13(%arg0: i32) -> (i32, i32, i32) {
    %c0_i32 = arith.constant 0 : i32
    %c0_i32_0 = arith.constant 0 : i32
    %c0_i32_1 = arith.constant 0 : i32
    return %arg0, %c0_i32, %c0_i32_0 : i32, i32, i32
  }
}

</mosaic_0001>

<llo_original>
// kernel: tpu_custom_call.1
$region0: #{tpu_custom_call.1}
  #allocation0 [shape = 'u32[]', space=smem, size = 0x4, offset = 0x4, fixed_abs, tag = 'smem constant byte address 0x4 - core index']
  #allocation1 [shape = 'u32[144,128]{1,0:T(1,128)}', space=vmem, size = 0x12000, scoped, tag = 'internal scratch']
  #allocation2 [shape = 'f32[8,512]{1,0:T(8,128)}', space=vmem, size = 0x4000, scoped, tag = 'scratch operand']
  %s0 = inlined_call_operand.vmem [shape: f32[2,4,256], index: 0, kind: input, shape index: {}]
  %s1 = inlined_call_operand.vmem [shape: f32[9,64], index: 1, kind: input, shape index: {}]
  %s2 = inlined_call_operand.vmem [shape: f32[8,4], index: 2, kind: input, shape index: {}]
  %s3 = inlined_call_operand.vmem [shape: f32[8,1], index: 3, kind: input, shape index: {}]
  %s4 = inlined_call_operand.vmem [shape: f32[8,1], index: 4, kind: input, shape index: {}]
  %s5 = inlined_call_operand.vmem [shape: f32[8,1], index: 5, kind: input, shape index: {}]
  %s6 = inlined_call_operand.vmem [shape: f32[8,9], index: 6, kind: input, shape index: {}]
  %s7 = inlined_call_operand.vmem [shape: f32[8,1], index: 7, kind: input, shape index: {}]
  %s8 = inlined_call_operand.vmem [shape: f32[8,1], index: 8, kind: input, shape index: {}]
  %s9 = inlined_call_operand.vmem [shape: f32[8,1], index: 9, kind: input, shape index: {}]
  %s10 = inlined_call_operand.vmem [shape: f32[8,8], index: 10, kind: input, shape index: {}]
  %s11 = inlined_call_operand.vmem [shape: f32[8,1], index: 11, kind: input, shape index: {}]
  %s12 = inlined_call_operand.vmem [shape: f32[8,1], index: 12, kind: input, shape index: {}]
  %s13 = inlined_call_operand.hbm [shape: f32[2,8,64], index: 13, kind: output, shape index: {}]
  %s14 = sld [smem:[#allocation0]]
  $region85: #{tpu_custom_call.1} parent=0
    _
  %s16 = ssub.s32 1, %s14
  %s17 = scalar_select 0, %s16, %s14
  $region1: #{tpu_custom_call.1} parent=0
    #allocation3 [shape = 'u8[8192]{0}', space=vmem, size = 0x2000, scoped, tag = 'output window, operand 0']
    #allocation4 [shape = 's32[2]{0}', space=sflag, size = 0x8, scoped, tag = 'scoped memory for tpu_custom_call.1']
    %18 = vsyncpa [#allocation4], 0
    %s19 = scalar_lea.sflag [#allocation4], 1
    %20 = vsyncpa %s19, 0
    loop: start=0, step=1, limit=4
    $region2: #{tpu_custom_call.1} parent=1 // loop_pre_header
      _
    $region3: #{tpu_custom_call.1} parent=1 // loop_header
      %s22 = sphi 0, %s26
      %p23 = scmp.ge.s32.totalorder %s22, 4
      %s32 = sphi 0, %s34
      %s35 = sphi 0, %s32
      %s36 = sphi 0, %s35
      %s52 = sphi 0, %s36
      %s56 = sphi 0, %s56
      %s58 = sphi 0, %s56
      %s59 = sphi 0, %s58
      %s73 = sphi 0, %s59
      %s77 = sphi 0, %s77
      %s79 = sphi 0, %s77
      %s80 = sphi 0, %s79
      %s94 = sphi 0, %s80
      %s98 = sphi 0, %s98
      %s100 = sphi 0, %s98
      %s101 = sphi 0, %s100
      %s115 = sphi 0, %s101
      %s119 = sphi 0, %s119
      %s121 = sphi 0, %s119
      %s122 = sphi 0, %s121
      %s136 = sphi 0, %s122
      %s140 = sphi 0, %s140
      %s142 = sphi 0, %s140
      %s143 = sphi 0, %s142
      %s157 = sphi 0, %s143
      %s161 = sphi 0, %s161
      %s163 = sphi 0, %s161
      %s164 = sphi 0, %s163
      %s178 = sphi 0, %s164
      %s182 = sphi 0, %s182
      %s184 = sphi 0, %s182
      %s185 = sphi 0, %s184
      %s199 = sphi 0, %s185
      %s203 = sphi 0, %s203
      %s205 = sphi 0, %s203
      %s206 = sphi 0, %s205
      %s220 = sphi 0, %s206
      %s224 = sphi 0, %s224
      %s226 = sphi 0, %s224
      %s227 = sphi 0, %s226
      %s241 = sphi 0, %s227
      %s245 = sphi 0, %s245
      %s247 = sphi 0, %s245
      %s248 = sphi 0, %s247
      %s262 = sphi 0, %s248
      %s266 = sphi 0, %s266
      %s268 = sphi 0, %s266
      %s269 = sphi 0, %s268
      %s283 = sphi 0, %s269
      %s287 = sphi 0, %s287
      %s289 = sphi 0, %s287
      %s290 = sphi 0, %s289
      %s304 = sphi 0, %s290
      %s310 = sphi 0, %s312
      %s313 = sphi 0, %s310
      %s314 = sphi 0, %s313
      %s330 = sphi 0, %s314
    $region4: #{tpu_custom_call.1} parent=1 // loop_header_branch
      %25 = sbr.rel (%p23) target = $region8
    $region5: #{tpu_custom_call.1} parent=1 // loop_body
      %s27 = ssub.s32 %s22, 1
      %s28 = ssub.s32 %s22, 2
      %s29 = sadd.s32 %s22, 1
      %s30 = ssub.s32 %s22, %s29
      %p31 = scmp.eq.s32.totalorder %s30, 0
      %s33 = sadd.s32 %s32, 1
      %s34 = scalar_select %p31, %s32, %s33
      %p37 = pneg %p31
      %p38 = scmp.eq.s32.totalorder %s22, 1
      %p39 = por %p37, %p38
      %p40 = scmp.ne.s32.totalorder %s32, %s35
      %p41 = scmp.eq.s32.totalorder %s22, 0
      %p42 = por %p40, %p41
      %p43 = scmp.ne.s32.totalorder %s32, %s35
      %p44 = scmp.eq.s32.totalorder %s27, 1
      %p45 = por %p43, %p44
      %p46 = scmp.ne.s32.totalorder %s35, %s36
      %p47 = scmp.eq.s32.totalorder %s27, 0
      %p48 = por %p46, %p47
      %p49 = scmp.ne.s32.totalorder %s35, %s36
      %p50 = scmp.eq.s32.totalorder %s28, 1
      %p51 = por %p49, %p50
      %p53 = scmp.ne.s32.totalorder %s36, %s52
      %p54 = scmp.eq.s32.totalorder %s28, 0
      %p55 = por %p53, %p54
      %s57 = sadd.s32 %s56, 1
      %p60 = scmp.eq.s32.totalorder %s22, 1
      %p61 = scmp.ne.s32.totalorder %s56, %s58
      %p62 = scmp.eq.s32.totalorder %s22, 0
      %p63 = por %p61, %p62
      %p64 = scmp.ne.s32.totalorder %s56, %s58
      %p65 = scmp.eq.s32.totalorder %s27, 1
      %p66 = por %p64, %p65
      %p67 = scmp.ne.s32.totalorder %s58, %s59
      %p68 = scmp.eq.s32.totalorder %s27, 0
      %p69 = por %p67, %p68
      %p70 = scmp.ne.s32.totalorder %s58, %s59
      %p71 = scmp.eq.s32.totalorder %s28, 1
      %p72 = por %p70, %p71
      %p74 = scmp.ne.s32.totalorder %s59, %s73
      %p75 = scmp.eq.s32.totalorder %s28, 0
      %p76 = por %p74, %p75
      %s78 = sadd.s32 %s77, 1
      %p81 = scmp.eq.s32.totalorder %s22, 1
      %p82 = scmp.ne.s32.totalorder %s77, %s79
      %p83 = scmp.eq.s32.totalorder %s22, 0
      %p84 = por %p82, %p83
      %p85 = scmp.ne.s32.totalorder %s77, %s79
      %p86 = scmp.eq.s32.totalorder %s27, 1
      %p87 = por %p85, %p86
      %p88 = scmp.ne.s32.totalorder %s79, %s80
      %p89 = scmp.eq.s32.totalorder %s27, 0
      %p90 = por %p88, %p89
      %p91 = scmp.ne.s32.totalorder %s79, %s80
      %p92 = scmp.eq.s32.totalorder %s28, 1
      %p93 = por %p91, %p92
      %p95 = scmp.ne.s32.totalorder %s80, %s94
      %p96 = scmp.eq.s32.totalorder %s28, 0
      %p97 = por %p95, %p96
      %s99 = sadd.s32 %s98, 1
      %p102 = scmp.eq.s32.totalorder %s22, 1
      %p103 = scmp.ne.s32.totalorder %s98, %s100
      %p104 = scmp.eq.s32.totalorder %s22, 0
      %p105 = por %p103, %p104
      %p106 = scmp.ne.s32.totalorder %s98, %s100
      %p107 = scmp.eq.s32.totalorder %s27, 1
      %p108 = por %p106, %p107
      %p109 = scmp.ne.s32.totalorder %s100, %s101
      %p110 = scmp.eq.s32.totalorder %s27, 0
      %p111 = por %p109, %p110
      %p112 = scmp.ne.s32.totalorder %s100, %s101
      %p113 = scmp.eq.s32.totalorder %s28, 1
      %p114 = por %p112, %p113
      %p116 = scmp.ne.s32.totalorder %s101, %s115
      %p117 = scmp.eq.s32.totalorder %s28, 0
      %p118 = por %p116, %p117
      %s120 = sadd.s32 %s119, 1
      %p123 = scmp.eq.s32.totalorder %s22, 1
      %p124 = scmp.ne.s32.totalorder %s119, %s121
      %p125 = scmp.eq.s32.totalorder %s22, 0
      %p126 = por %p124, %p125
      %p127 = scmp.ne.s32.totalorder %s119, %s121
      %p128 = scmp.eq.s32.totalorder %s27, 1
      %p129 = por %p127, %p128
      %p130 = scmp.ne.s32.totalorder %s121, %s122
      %p131 = scmp.eq.s32.totalorder %s27, 0
      %p132 = por %p130, %p131
      %p133 = scmp.ne.s32.totalorder %s121, %s122
      %p134 = scmp.eq.s32.totalorder %s28, 1
      %p135 = por %p133, %p134
      %p137 = scmp.ne.s32.totalorder %s122, %s136
      %p138 = scmp.eq.s32.totalorder %s28, 0
      %p139 = por %p137, %p138
      %s141 = sadd.s32 %s140, 1
      %p144 = scmp.eq.s32.totalorder %s22, 1
      %p145 = scmp.ne.s32.totalorder %s140, %s142
      %p146 = scmp.eq.s32.totalorder %s22, 0
      %p147 = por %p145, %p146
      %p148 = scmp.ne.s32.totalorder %s140, %s142
      %p149 = scmp.eq.s32.totalorder %s27, 1
      %p150 = por %p148, %p149
      %p151 = scmp.ne.s32.totalorder %s142, %s143
      %p152 = scmp.eq.s32.totalorder %s27, 0
      %p153 = por %p151, %p152
      %p154 = scmp.ne.s32.totalorder %s142, %s143
      %p155 = scmp.eq.s32.totalorder %s28, 1
      %p156 = por %p154, %p155
      %p158 = scmp.ne.s32.totalorder %s143, %s157
      %p159 = scmp.eq.s32.totalorder %s28, 0
      %p160 = por %p158, %p159
      %s162 = sadd.s32 %s161, 1
      %p165 = scmp.eq.s32.totalorder %s22, 1
      %p166 = scmp.ne.s32.totalorder %s161, %s163
      %p167 = scmp.eq.s32.totalorder %s22, 0
      %p168 = por %p166, %p167
      %p169 = scmp.ne.s32.totalorder %s161, %s163
      %p170 = scmp.eq.s32.totalorder %s27, 1
      %p171 = por %p169, %p170
      %p172 = scmp.ne.s32.totalorder %s163, %s164
      %p173 = scmp.eq.s32.totalorder %s27, 0
      %p174 = por %p172, %p173
      %p175 = scmp.ne.s32.totalorder %s163, %s164
      %p176 = scmp.eq.s32.totalorder %s28, 1
      %p177 = por %p175, %p176
      %p179 = scmp.ne.s32.totalorder %s164, %s178
      %p180 = scmp.eq.s32.totalorder %s28, 0
      %p181 = por %p179, %p180
      %s183 = sadd.s32 %s182, 1
      %p186 = scmp.eq.s32.totalorder %s22, 1
      %p187 = scmp.ne.s32.totalorder %s182, %s184
      %p188 = scmp.eq.s32.totalorder %s22, 0
      %p189 = por %p187, %p188
      %p190 = scmp.ne.s32.totalorder %s182, %s184
      %p191 = scmp.eq.s32.totalorder %s27, 1
      %p192 = por %p190, %p191
      %p193 = scmp.ne.s32.totalorder %s184, %s185
      %p194 = scmp.eq.s32.totalorder %s27, 0
      %p195 = por %p193, %p194
      %p196 = scmp.ne.s32.totalorder %s184, %s185
      %p197 = scmp.eq.s32.totalorder %s28, 1
      %p198 = por %p196, %p197
      %p200 = scmp.ne.s32.totalorder %s185, %s199
      %p201 = scmp.eq.s32.totalorder %s28, 0
      %p202 = por %p200, %p201
      %s204 = sadd.s32 %s203, 1
      %p207 = scmp.eq.s32.totalorder %s22, 1
      %p208 = scmp.ne.s32.totalorder %s203, %s205
      %p209 = scmp.eq.s32.totalorder %s22, 0
      %p210 = por %p208, %p209
      %p211 = scmp.ne.s32.totalorder %s203, %s205
      %p212 = scmp.eq.s32.totalorder %s27, 1
      %p213 = por %p211, %p212
      %p214 = scmp.ne.s32.totalorder %s205, %s206
      %p215 = scmp.eq.s32.totalorder %s27, 0
      %p216 = por %p214, %p215
      %p217 = scmp.ne.s32.totalorder %s205, %s206
      %p218 = scmp.eq.s32.totalorder %s28, 1
      %p219 = por %p217, %p218
      %p221 = scmp.ne.s32.totalorder %s206, %s220
      %p222 = scmp.eq.s32.totalorder %s28, 0
      %p223 = por %p221, %p222
      %s225 = sadd.s32 %s224, 1
      %p228 = scmp.eq.s32.totalorder %s22, 1
      %p229 = scmp.ne.s32.totalorder %s224, %s226
      %p230 = scmp.eq.s32.totalorder %s22, 0
      %p231 = por %p229, %p230
      %p232 = scmp.ne.s32.totalorder %s224, %s226
      %p233 = scmp.eq.s32.totalorder %s27, 1
      %p234 = por %p232, %p233
      %p235 = scmp.ne.s32.totalorder %s226, %s227
      %p236 = scmp.eq.s32.totalorder %s27, 0
      %p237 = por %p235, %p236
      %p238 = scmp.ne.s32.totalorder %s226, %s227
      %p239 = scmp.eq.s32.totalorder %s28, 1
      %p240 = por %p238, %p239
      %p242 = scmp.ne.s32.totalorder %s227, %s241
      %p243 = scmp.eq.s32.totalorder %s28, 0
      %p244 = por %p242, %p243
      %s246 = sadd.s32 %s245, 1
      %p249 = scmp.eq.s32.totalorder %s22, 1
      %p250 = scmp.ne.s32.totalorder %s245, %s247
      %p251 = scmp.eq.s32.totalorder %s22, 0
      %p252 = por %p250, %p251
      %p253 = scmp.ne.s32.totalorder %s245, %s247
      %p254 = scmp.eq.s32.totalorder %s27, 1
      %p255 = por %p253, %p254
      %p256 = scmp.ne.s32.totalorder %s247, %s248
      %p257 = scmp.eq.s32.totalorder %s27, 0
      %p258 = por %p256, %p257
      %p259 = scmp.ne.s32.totalorder %s247, %s248
      %p260 = scmp.eq.s32.totalorder %s28, 1
      %p261 = por %p259, %p260
      %p263 = scmp.ne.s32.totalorder %s248, %s262
      %p264 = scmp.eq.s32.totalorder %s28, 0
      %p265 = por %p263, %p264
      %s267 = sadd.s32 %s266, 1
      %p270 = scmp.eq.s32.totalorder %s22, 1
      %p271 = scmp.ne.s32.totalorder %s266, %s268
      %p272 = scmp.eq.s32.totalorder %s22, 0
      %p273 = por %p271, %p272
      %p274 = scmp.ne.s32.totalorder %s266, %s268
      %p275 = scmp.eq.s32.totalorder %s27, 1
      %p276 = por %p274, %p275
      %p277 = scmp.ne.s32.totalorder %s268, %s269
      %p278 = scmp.eq.s32.totalorder %s27, 0
      %p279 = por %p277, %p278
      %p280 = scmp.ne.s32.totalorder %s268, %s269
      %p281 = scmp.eq.s32.totalorder %s28, 1
      %p282 = por %p280, %p281
      %p284 = scmp.ne.s32.totalorder %s269, %s283
      %p285 = scmp.eq.s32.totalorder %s28, 0
      %p286 = por %p284, %p285
      %s288 = sadd.s32 %s287, 1
      %p291 = scmp.eq.s32.totalorder %s22, 1
      %p292 = scmp.ne.s32.totalorder %s287, %s289
      %p293 = scmp.eq.s32.totalorder %s22, 0
      %p294 = por %p292, %p293
      %p295 = scmp.ne.s32.totalorder %s287, %s289
      %p296 = scmp.eq.s32.totalorder %s27, 1
      %p297 = por %p295, %p296
      %p298 = scmp.ne.s32.totalorder %s289, %s290
      %p299 = scmp.eq.s32.totalorder %s27, 0
      %p300 = por %p298, %p299
      %p301 = scmp.ne.s32.totalorder %s289, %s290
      %p302 = scmp.eq.s32.totalorder %s28, 1
      %p303 = por %p301, %p302
      %p305 = scmp.ne.s32.totalorder %s290, %s304
      %p306 = scmp.eq.s32.totalorder %s28, 0
      %p307 = por %p305, %p306
      %s308 = ssub.s32 %s22, %s29
      %p309 = scmp.eq.s32.totalorder %s308, 0
      %s311 = sadd.s32 %s310, 1
      %s312 = scalar_select %p309, %s310, %s311
      %p315 = pneg %p309
      %p316 = scmp.eq.s32.totalorder %s22, 1
      %p317 = por %p315, %p316
      %p318 = scmp.ne.s32.totalorder %s310, %s313
      %p319 = scmp.eq.s32.totalorder %s22, 0
      %p320 = por %p318, %p319
      %p321 = scmp.ne.s32.totalorder %s310, %s313
      %p322 = scmp.eq.s32.totalorder %s27, 1
      %p323 = por %p321, %p322
      %p324 = scmp.ne.s32.totalorder %s313, %s314
      %p325 = scmp.eq.s32.totalorder %s27, 0
      %p326 = por %p324, %p325
      %p327 = scmp.ne.s32.totalorder %s313, %s314
      %p328 = scmp.eq.s32.totalorder %s28, 1
      %p329 = por %p327, %p328
      %p331 = scmp.ne.s32.totalorder %s314, %s330
      %p332 = scmp.eq.s32.totalorder %s28, 0
      %p333 = por %p331, %p332
      %p334 = scmp.le.s32.totalorder 1, %s22
      %p335 = scmp.lt.s32.totalorder %s22, 3
      %p336 = pnand %p334, %p335
      %p337 = pneg %p336
      // Predicated region
      $region9: #{tpu_custom_call.1} parent=5 // pred_check
        _
      $region10: #{tpu_custom_call.1} parent=5 // pred_check_branch
        %339 = sbr.rel (%p336) target = $region12
      $region11: #{tpu_custom_call.1} parent=5 // pred_region
        %s340 = ssub.s32 %s22, 1
        // Predicated region
        $region13: #{tpu_custom_call.1} parent=11 // pred_check
          %p341 = pneg %p69
        $region14: #{tpu_custom_call.1} parent=11 // pred_check_branch
          %343 = sbr.rel (%p341) target = $region16
        $region15: #{tpu_custom_call.1} parent=11 // pred_region
          _
        $region16: #{tpu_custom_call.1} parent=11 // pred_fallthru
          _
        // Predicated region
        $region17: #{tpu_custom_call.1} parent=11 // pred_check
          %p344 = pneg %p90
        $region18: #{tpu_custom_call.1} parent=11 // pred_check_branch
          %346 = sbr.rel (%p344) target = $region20
        $region19: #{tpu_custom_call.1} parent=11 // pred_region
          _
        $region20: #{tpu_custom_call.1} parent=11 // pred_fallthru
          _
        // Predicated region
        $region21: #{tpu_custom_call.1} parent=11 // pred_check
          %p347 = pneg %p111
        $region22: #{tpu_custom_call.1} parent=11 // pred_check_branch
          %349 = sbr.rel (%p347) target = $region24
        $region23: #{tpu_custom_call.1} parent=11 // pred_region
          _
        $region24: #{tpu_custom_call.1} parent=11 // pred_fallthru
          _
        // Predicated region
        $region25: #{tpu_custom_call.1} parent=11 // pred_check
          %p350 = pneg %p132
        $region26: #{tpu_custom_call.1} parent=11 // pred_check_branch
          %352 = sbr.rel (%p350) target = $region28
        $region27: #{tpu_custom_call.1} parent=11 // pred_region
          _
        $region28: #{tpu_custom_call.1} parent=11 // pred_fallthru
          _
        // Predicated region
        $region29: #{tpu_custom_call.1} parent=11 // pred_check
          %p353 = pneg %p153
        $region30: #{tpu_custom_call.1} parent=11 // pred_check_branch
          %355 = sbr.rel (%p353) target = $region32
        $region31: #{tpu_custom_call.1} parent=11 // pred_region
          _
        $region32: #{tpu_custom_call.1} parent=11 // pred_fallthru
          _
        // Predicated region
        $region33: #{tpu_custom_call.1} parent=11 // pred_check
          %p356 = pneg %p174
        $region34: #{tpu_custom_call.1} parent=11 // pred_check_branch
          %358 = sbr.rel (%p356) target = $region36
        $region35: #{tpu_custom_call.1} parent=11 // pred_region
          _
        $region36: #{tpu_custom_call.1} parent=11 // pred_fallthru
          _
        // Predicated region
        $region37: #{tpu_custom_call.1} parent=11 // pred_check
          %p359 = pneg %p195
        $region38: #{tpu_custom_call.1} parent=11 // pred_check_branch
          %361 = sbr.rel (%p359) target = $region40
        $region39: #{tpu_custom_call.1} parent=11 // pred_region
          _
        $region40: #{tpu_custom_call.1} parent=11 // pred_fallthru
          _
        // Predicated region
        $region41: #{tpu_custom_call.1} parent=11 // pred_check
          %p362 = pneg %p216
        $region42: #{tpu_custom_call.1} parent=11 // pred_check_branch
          %364 = sbr.rel (%p362) target = $region44
        $region43: #{tpu_custom_call.1} parent=11 // pred_region
          _
        $region44: #{tpu_custom_call.1} parent=11 // pred_fallthru
          _
        // Predicated region
        $region45: #{tpu_custom_call.1} parent=11 // pred_check
          %p365 = pneg %p237
        $region46: #{tpu_custom_call.1} parent=11 // pred_check_branch
          %367 = sbr.rel (%p365) target = $region48
        $region47: #{tpu_custom_call.1} parent=11 // pred_region
          _
        $region48: #{tpu_custom_call.1} parent=11 // pred_fallthru
          _
        // Predicated region
        $region49: #{tpu_custom_call.1} parent=11 // pred_check
          %p368 = pneg %p258
        $region50: #{tpu_custom_call.1} parent=11 // pred_check_branch
          %370 = sbr.rel (%p368) target = $region52
        $region51: #{tpu_custom_call.1} parent=11 // pred_region
          _
        $region52: #{tpu_custom_call.1} parent=11 // pred_fallthru
          _
        // Predicated region
        $region53: #{tpu_custom_call.1} parent=11 // pred_check
          %p371 = pneg %p279
        $region54: #{tpu_custom_call.1} parent=11 // pred_check_branch
          %373 = sbr.rel (%p371) target = $region56
        $region55: #{tpu_custom_call.1} parent=11 // pred_region
          _
        $region56: #{tpu_custom_call.1} parent=11 // pred_fallthru
          _
        // Predicated region
        $region57: #{tpu_custom_call.1} parent=11 // pred_check
          %p374 = pneg %p300
        $region58: #{tpu_custom_call.1} parent=11 // pred_check_branch
          %376 = sbr.rel (%p374) target = $region60
        $region59: #{tpu_custom_call.1} parent=11 // pred_region
          _
        $region60: #{tpu_custom_call.1} parent=11 // pred_fallthru
          _
      $region12: #{tpu_custom_call.1} parent=5 // pred_fallthru
        _
      %p377 = scmp.lt.s32.totalorder %s22, 2
      // Predicated region
      $region61: #{tpu_custom_call.1} parent=5 // pred_check
        %p378 = pneg %p377
      $region62: #{tpu_custom_call.1} parent=5 // pred_check_branch
        %380 = sbr.rel (%p378) target = $region64
      $region63: #{tpu_custom_call.1} parent=5 // pred_region
        // Predicated region
        $region65: #{tpu_custom_call.1} parent=63 // pred_check
          %p381 = pneg %p42
        $region66: #{tpu_custom_call.1} parent=63 // pred_check_branch
          %383 = sbr.rel (%p381) target = $region68
        $region67: #{tpu_custom_call.1} parent=63 // pred_region
          %p384 = scmp.lt.s32.totalorder %s22, 1
          %s385 = scalar_select %p384, %s22, 1
          %s386 = smul.addr %s385, 2
          %s387 = smul.addr %s386, 4
          %s388 = scalar_lea.vmem %s0, %s387
        $region68: #{tpu_custom_call.1} parent=63 // pred_fallthru
          _
      $region64: #{tpu_custom_call.1} parent=5 // pred_fallthru
        _
      %p389 = scmp.le.s32.totalorder 1, %s22
      %p390 = scmp.lt.s32.totalorder %s22, 3
      %p391 = pnand %p389, %p390
      %p392 = pneg %p391
      // Predicated region
      $region69: #{tpu_custom_call.1} parent=5 // pred_check
        _
      $region70: #{tpu_custom_call.1} parent=5 // pred_check_branch
        %394 = sbr.rel (%p391) target = $region72
      $region71: #{tpu_custom_call.1} parent=5 // pred_region
        %s395 = ssub.s32 %s22, 1
        %p396 = scmp.lt.s32.totalorder %s27, 1
        %s397 = scalar_select %p396, %s27, 1
        %s398 = smul.addr %s397, 2
        %s399 = smul.addr %s398, 4
        %s400 = scalar_lea.vmem %s0, %s399
        %p401 = pneg %p48
        %p402 = pneg %p45
        %p403 = pneg %p69
        %p404 = pneg %p66
        %p405 = pneg %p90
        %p406 = pneg %p87
        %p407 = pneg %p111
        %p408 = pneg %p108
        %p409 = pneg %p132
        %p410 = pneg %p129
        %p411 = pneg %p153
        %p412 = pneg %p150
        %p413 = pneg %p174
        %p414 = pneg %p171
        %p415 = pneg %p195
        %p416 = pneg %p192
        %p417 = pneg %p216
        %p418 = pneg %p213
        %p419 = pneg %p237
        %p420 = pneg %p234
        %p421 = pneg %p258
        %p422 = pneg %p255
        %p423 = pneg %p279
        %p424 = pneg %p276
        %p425 = pneg %p300
        %p426 = pneg %p297
        %p427 = pneg %p326
        %p428 = pneg %p323
        %s429 = sand.u32 %s313, 1
        %s430 = scalar_lea.sflag [#allocation4], %s429
        %s431 = sand.u32 %s313, 1
        %s432 = smul.addr %s431, 8
        %s433 = scalar_lea.vmem [#allocation3], %s432
        %p434 = scmp.lt.s32.totalorder %s27, 1
        %s435 = scalar_select %p434, %s27, 1
        %s436 = smul.addr %s435, 2
        %s437 = smul.addr %s436, 4
        %s438 = scalar_lea.vmem %s0, %s437
        %v439 = vld [vmem:[%s438] sm:$0xff]
        %v440 = vld [vmem:[%s2] sm:$0xff]
        %442 = vset.pattern.permute.xlu0 0
        %443 = vperm.xlu0 %442, %v440
        %v444 = vpop.permute.xlu0 %443
        %v447 = vlaneseq
        %v448 = vshrl.u32 %v447, 7
        %v449 = vsub.s32 0, %v448
        %v450 = vrot.slane %v439, %v449
        %v451 = vlaneseq
        %v452 = vshrl.u32 %v451, 7
        %v453 = vsub.s32 4, %v452
        %v454 = vrot.slane %v439, %v453
        %v457 = vlaneseq
        %v458 = vshrl.u32 %v457, 7
        %v459 = vsub.s32 0, %v458
        %v460 = vrot.slane %v450, %v459
        %v461 = vlaneseq
        %v462 = vshrl.u32 %v461, 7
        %v463 = vsub.s32 0, %v462
        %v464 = vrot.slane %v454, %v463
        %v465 = vmul.f32 %v444, %v460
        %v466 = vmul.f32 %v444, %v464
        %467 = vset.pattern.permute.xlu0 1
        %468 = vperm.xlu0 %467, %v440
        %v469 = vpop.permute.xlu0 %468
        %v471 = vlaneseq
        %v472 = vshrl.u32 %v471, 7
        %v473 = vsub.s32 1, %v472
        %v474 = vrot.slane %v439, %v473
        %v475 = vlaneseq
        %v476 = vshrl.u32 %v475, 7
        %v477 = vsub.s32 5, %v476
        %v478 = vrot.slane %v439, %v477
        %v481 = vlaneseq
        %v482 = vshrl.u32 %v481, 7
        %v483 = vsub.s32 1, %v482
        %v484 = vrot.slane %v474, %v483
        %v485 = vlaneseq
        %v486 = vshrl.u32 %v485, 7
        %v487 = vsub.s32 1, %v486
        %v488 = vrot.slane %v478, %v487
        %v489 = vmul.f32 %v469, %v484
        %v490 = vmul.f32 %v469, %v488
        %v491 = vadd.f32 %v465, %v489
        %v492 = vadd.f32 %v466, %v490
        %493 = vset.pattern.permute.xlu0 2
        %494 = vperm.xlu0 %493, %v440
        %v495 = vpop.permute.xlu0 %494
        %v497 = vlaneseq
        %v498 = vshrl.u32 %v497, 7
        %v499 = vsub.s32 2, %v498
        %v500 = vrot.slane %v439, %v499
        %v501 = vlaneseq
        %v502 = vshrl.u32 %v501, 7
        %v503 = vsub.s32 6, %v502
        %v504 = vrot.slane %v439, %v503
        %v507 = vlaneseq
        %v508 = vshrl.u32 %v507, 7
        %v509 = vsub.s32 2, %v508
        %v510 = vrot.slane %v500, %v509
        %v511 = vlaneseq
        %v512 = vshrl.u32 %v511, 7
        %v513 = vsub.s32 2, %v512
        %v514 = vrot.slane %v504, %v513
        %v515 = vmul.f32 %v495, %v510
        %v516 = vmul.f32 %v495, %v514
        %v517 = vadd.f32 %v491, %v515
        %v518 = vadd.f32 %v492, %v516
        %519 = vset.pattern.permute.xlu0 3
        %520 = vperm.xlu0 %519, %v440
        %v521 = vpop.permute.xlu0 %520
        %v523 = vlaneseq
        %v524 = vshrl.u32 %v523, 7
        %v525 = vsub.s32 3, %v524
        %v526 = vrot.slane %v439, %v525
        %v527 = vlaneseq
        %v528 = vshrl.u32 %v527, 7
        %v529 = vsub.s32 7, %v528
        %v530 = vrot.slane %v439, %v529
        %v533 = vlaneseq
        %v534 = vshrl.u32 %v533, 7
        %v535 = vsub.s32 3, %v534
        %v536 = vrot.slane %v526, %v535
        %v537 = vlaneseq
        %v538 = vshrl.u32 %v537, 7
        %v539 = vsub.s32 3, %v538
        %v540 = vrot.slane %v530, %v539
        %v541 = vmul.f32 %v521, %v536
        %v542 = vmul.f32 %v521, %v540
        %v543 = vadd.f32 %v517, %v541
        %v544 = vadd.f32 %v518, %v542
        %v545 = vld [vmem:[%s3] sm:$0xff]
        %547 = vset.pattern.permute.xlu0 0
        %548 = vperm.xlu0 %547, %v545
        %v549 = vpop.permute.xlu0 %548
        %v551 = vmul.f32 %v543, %v549
        %v552 = vmul.f32 %v544, %v549
        %v553 = vld [vmem:[%s4] sm:$0xff]
        %555 = vset.pattern.permute.xlu0 0
        %556 = vperm.xlu0 %555, %v553
        %v557 = vpop.permute.xlu0 %556
        %v559 = vadd.f32 %v551, %v557
        %v560 = vadd.f32 %v552, %v557
        %vm561 = vcmp.gt.f32.partialorder %v559, 0.0
        %vm562 = vcmp.gt.f32.partialorder %v560, 0.0
        %v563 = vld [vmem:[%s5] sm:$0xff]
        %565 = vset.pattern.permute.xlu0 0
        %566 = vperm.xlu0 %565, %v563
        %v567 = vpop.permute.xlu0 %566
        %v569 = vmul.f32 %v559, %v567
        %v570 = vmul.f32 %v560, %v567
        %v571 = vsel %vm561, %v559, %v569
        %v572 = vsel %vm562, %v560, %v570
        %573 = vst [vmem:[#allocation2] sm:$0xff] %v571
        %574 = vst [vmem:[#allocation2 + $0x8] sm:$0xff] %v572
        %v575 = vld [vmem:[%s6] sm:$0xff]
        %v576 = vld [vmem:[%s1] sm:$0xff]
        %v577 = vld [vmem:[#allocation2 + $0x8] sm:$0xff]
        %579 = vset.pattern.permute.xlu0 0
        %580 = vperm.xlu0 %579, %v575
        %v581 = vpop.permute.xlu0 %580
        %v583 = vmul.f32 %v577, %v581
        %v584 = vlaneseq
        %v585 = vshrl.u32 %v584, 7
        %v586 = vsub.s32 0, %v585
        %v587 = vrot.slane %v576, %v586
        %589 = vrot.lane.b32.xlu0 %v587, 55
        %v590 = vpop.permute.xlu0 %589
        %v592 = vmul.f32 %v583, %v590
        %v593 = vld [vmem:[#allocation2] sm:$0xff]
        %594 = vset.pattern.permute.xlu0 1
        %595 = vperm.xlu0 %594, %v575
        %v596 = vpop.permute.xlu0 %595
        %v598 = vmul.f32 %v593, %v596
        %v599 = vmul.f32 %v577, %v596
        %v600 = vlaneseq
        %v601 = vshrl.u32 %v600, 7
        %v602 = vsub.s32 1, %v601
        %v603 = vrot.slane %v576, %v602
        %605 = vrot.lane.b32.xlu0 %v603, 120
        %v606 = vpop.permute.xlu0 %605
        %v608 = vmul.f32 %v598, %v606
        %v609 = vmul.f32 %v599, %v606
        %612 = vrot.lane.b32.xlu0 %v608, 63
        %v613 = vpop.permute.xlu0 %612
        %614 = vrot.lane.b32.xlu0 %v609, 63
        %v615 = vpop.permute.xlu0 %614
        %vm616 = vcmask 515072
        %v617 = vsel %vm616, %v613, %v615
        %v619 = vadd.f32 %v592, %v617
        %620 = vset.pattern.permute.xlu0 2
        %621 = vperm.xlu0 %620, %v575
        %v622 = vpop.permute.xlu0 %621
        %v624 = vmul.f32 %v577, %v622
        %v625 = vlaneseq
        %v626 = vshrl.u32 %v625, 7
        %v627 = vsub.s32 2, %v626
        %v628 = vrot.slane %v576, %v627
        %630 = vrot.lane.b32.xlu0 %v628, 56
        %v631 = vpop.permute.xlu0 %630
        %v633 = vmul.f32 %v624, %v631
        %635 = vrot.lane.b32.xlu0 %v633, 127
        %v636 = vpop.permute.xlu0 %635
        %v638 = vadd.f32 %v619, %v636
        %v639 = vld [vmem:[#allocation2] sm:$0xff]
        %640 = vset.pattern.permute.xlu0 3
        %641 = vperm.xlu0 %640, %v575
        %v642 = vpop.permute.xlu0 %641
        %v644 = vmul.f32 %v639, %v642
        %v645 = vlaneseq
        %v646 = vshrl.u32 %v645, 7
        %v647 = vsub.s32 3, %v646
        %v648 = vrot.slane %v576, %v647
        %650 = vrot.lane.b32.xlu0 %v648, 63
        %v651 = vpop.permute.xlu0 %650
        %v653 = vmul.f32 %v644, %v651
        %655 = vrot.lane.b32.xlu0 %v653, 120
        %v656 = vpop.permute.xlu0 %655
        %v658 = vadd.f32 %v638, %v656
        %659 = vset.pattern.permute.xlu0 4
        %660 = vperm.xlu0 %659, %v575
        %v661 = vpop.permute.xlu0 %660
        %v663 = vmul.f32 %v639, %v661
        %665 = vrot.lane.b32.xlu0 %v663, 55
        %v666 = vpop.permute.xlu0 %665
        %v668 = vadd.f32 %v658, %v666
        %669 = vset.pattern.permute.xlu0 5
        %670 = vperm.xlu0 %669, %v575
        %v671 = vpop.permute.xlu0 %670
        %v673 = vmul.f32 %v639, %v671
        %675 = vrot.lane.b32.xlu0 %v673, 119
        %v676 = vpop.permute.xlu0 %675
        %v678 = vadd.f32 %v668, %v676
        %679 = vset.pattern.permute.xlu0 6
        %680 = vperm.xlu0 %679, %v575
        %v681 = vpop.permute.xlu0 %680
        %v683 = vmul.f32 %v577, %v681
        %v684 = vlaneseq
        %v685 = vshrl.u32 %v684, 7
        %v686 = vsub.s32 6, %v685
        %v687 = vrot.slane %v576, %v686
        %689 = vrot.lane.b32.xlu0 %v687, 63
        %v690 = vpop.permute.xlu0 %689
        %v692 = vmul.f32 %v683, %v690
        %694 = vrot.lane.b32.xlu0 %v692, 120
        %v695 = vpop.permute.xlu0 %694
        %v697 = vadd.f32 %v678, %v695
        %698 = vset.pattern.permute.xlu0 7
        %699 = vperm.xlu0 %698, %v575
        %v700 = vpop.permute.xlu0 %699
        %v702 = vmul.f32 %v577, %v700
        %704 = vrot.lane.b32.xlu0 %v702, 55
        %v705 = vpop.permute.xlu0 %704
        %v707 = vadd.f32 %v697, %v705
        %708 = vset.pattern.permute.xlu0 8
        %709 = vperm.xlu0 %708, %v575
        %v710 = vpop.permute.xlu0 %709
        %v712 = vmul.f32 %v577, %v710
        %714 = vrot.lane.b32.xlu0 %v712, 119
        %v715 = vpop.permute.xlu0 %714
        %v717 = vadd.f32 %v707, %v715
        %v718 = vld [vmem:[%s7] sm:$0xff]
        %720 = vset.pattern.permute.xlu0 0
        %721 = vperm.xlu0 %720, %v718
        %v722 = vpop.permute.xlu0 %721
        %v724 = vmul.f32 %v717, %v722
        %v725 = vld [vmem:[%s8] sm:$0xff]
        %727 = vset.pattern.permute.xlu0 0
        %728 = vperm.xlu0 %727, %v725
        %v729 = vpop.permute.xlu0 %728
        %v731 = vadd.f32 %v724, %v729
        %vm732 = vcmp.gt.f32.partialorder %v731, 0.0
        %v733 = vld [vmem:[%s9] sm:$0xff]
        %735 = vset.pattern.permute.xlu0 0
        %736 = vperm.xlu0 %735, %v733
        %v737 = vpop.permute.xlu0 %736
        %v739 = vmul.f32 %v731, %v737
        %v740 = vsel %vm732, %v731, %v739
        %v741 = vld [vmem:[%s10] sm:$0xff]
        %743 = vrot.lane.b32.xlu0 %v740, 73
        %v744 = vpop.permute.xlu0 %743
        %vm746 = vcmask 64512
        %v748 = vsel %vm746, %v741, 0
        %750 = vmatprep.subr.mxu0 0.0
        %751 = vmatpush1.msra.mxu0 %v744
        %752 = vmatprep.subr.mxu0 0.0
        %753 = vmatpush1.msra.mxu0 0.0
        %754 = vmatprep.subr.mxu0 0.0
        %755 = vmatpush1.msra.mxu0 0.0
        %756 = vmatprep.subr.mxu0 0.0
        %757 = vmatpush1.msra.mxu0 0.0
        %758 = vmatprep.subr.mxu0 0.0
        %759 = vmatpush1.msra.mxu0 0.0
        %760 = vmatprep.subr.mxu0 0.0
        %761 = vmatpush1.msra.mxu0 0.0
        %762 = vmatprep.subr.mxu0 0.0
        %763 = vmatpush1.msra.mxu0 0.0
        %764 = vmatprep.subr.mxu0 0.0
        %765 = vmatpush1.msra.mxu0 0.0
        %766 = vmatprep.subr.mxu0 0.0
        %767 = vmatpush1.msra.mxu0 0.0
        %768 = vmatprep.subr.mxu0 0.0
        %769 = vmatpush1.msra.mxu0 0.0
        %770 = vmatprep.subr.mxu0 0.0
        %771 = vmatpush1.msra.mxu0 0.0
        %772 = vmatprep.subr.mxu0 0.0
        %773 = vmatpush1.msra.mxu0 0.0
        %774 = vmatprep.subr.mxu0 0.0
        %775 = vmatpush1.msra.mxu0 0.0
        %776 = vmatprep.subr.mxu0 0.0
        %777 = vmatpush1.msra.mxu0 0.0
        %778 = vmatprep.subr.mxu0 0.0
        %779 = vmatpush1.msra.mxu0 0.0
        %780 = vmatprep.subr.mxu0 0.0
        %781 = vmatpush1.msra.mxu0 0.0
        %782 = vmatprep.subr.mxu0 0.0
        %783 = vmatpush1.msra.mxu0 0.0
        %784 = vmatprep.subr.mxu0 0.0
        %785 = vmatpush1.msra.mxu0 0.0
        %786 = vmatprep.subr.mxu0 0.0
        %787 = vmatpush1.msra.mxu0 0.0
        %788 = vmatprep.subr.mxu0 0.0
        %789 = vmatpush1.msra.mxu0 0.0
        %790 = vmatprep.subr.mxu0 0.0
        %791 = vmatpush1.msra.mxu0 0.0
        %792 = vmatprep.subr.mxu0 0.0
        %793 = vmatpush1.msra.mxu0 0.0
        %794 = vmatprep.subr.mxu0 0.0
        %795 = vmatpush1.msra.mxu0 0.0
        %796 = vmatprep.subr.mxu0 0.0
        %797 = vmatpush1.msra.mxu0 0.0
        %798 = vmatprep.subr.mxu0 0.0
        %799 = vmatpush1.msra.mxu0 0.0
        %800 = vmatprep.subr.mxu0 0.0
        %801 = vmatpush1.msra.mxu0 0.0
        %802 = vmatprep.subr.mxu0 0.0
        %803 = vmatpush1.msra.mxu0 0.0
        %804 = vmatprep.subr.mxu0 0.0
        %805 = vmatpush1.msra.mxu0 0.0
        %806 = vmatprep.subr.mxu0 0.0
        %807 = vmatpush1.msra.mxu0 0.0
        %808 = vmatprep.subr.mxu0 0.0
        %809 = vmatpush1.msra.mxu0 0.0
        %810 = vmatprep.subr.mxu0 0.0
        %811 = vmatpush1.msra.mxu0 0.0
        %812 = vmatprep.subr.mxu0 0.0
        %813 = vmatpush1.msra.mxu0 0.0
        %814 = vmatprep.mubr.f32.mxu0 0.0
        %815 = vmatmul.mubr.f32.gmra.mrb[0].mxu0 %v748
        %v816 = vpop.f32.mrb[0].mxu0
        %v817 = vadd.f32 0.0, %v816
        %v818 = vpop.f32.mrb[0].mxu0
        %819 = vdwg.mxu0
        %v820 = vld [vmem:[%s11] sm:$0xff]
        %822 = vset.pattern.permute.xlu0 0
        %823 = vperm.xlu0 %822, %v820
        %v824 = vpop.permute.xlu0 %823
        %v826 = vmul.f32 %v817, %v824
        %v827 = vld [vmem:[%s12] sm:$0xff]
        %829 = vset.pattern.permute.xlu0 0
        %830 = vperm.xlu0 %829, %v827
        %v831 = vpop.permute.xlu0 %830
        %v833 = vadd.f32 %v826, %v831
        %vm834 = vcmask 523264
        %835 = vst.msk [vmem:[%s433] sm:$0xff] %vm834, %v833
        %s836 = sand.u32 %s313, 1
        %s837 = scalar_lea.sflag [#allocation4], %s836
        %s838 = sand.u32 %s313, 1
        %s839 = smul.addr %s838, 8
        %s840 = scalar_lea.vmem [#allocation3], %s839
        // Predicated region
        $region73: #{tpu_custom_call.1} parent=71 // pred_check
          %p841 = pneg %p323
        $region74: #{tpu_custom_call.1} parent=71 // pred_check_branch
          %843 = sbr.rel (%p841) target = $region76
        $region75: #{tpu_custom_call.1} parent=71 // pred_region
          %s845 = ssub.s32 128, 128
          %846 = vsyncadd %s837, %s845
          %s847 = smul.addr %s27, 128
          %s848 = scalar_lea.hbm %s13, %s847
          %s850 = sshll.u32 %s840, 4
          %s851 = int_to_ptr.vmem [resolvable:$true] %s850
          %853 = dma.vmem_to_hbm [thread:$0]  %s851, 128, %s848, %s837
        $region76: #{tpu_custom_call.1} parent=71 // pred_fallthru
          _
      $region72: #{tpu_custom_call.1} parent=5 // pred_fallthru
        _
      %p854 = scmp.le.s32.totalorder 2, %s22
      // Predicated region
      $region77: #{tpu_custom_call.1} parent=5 // pred_check
        %p855 = pneg %p854
      $region78: #{tpu_custom_call.1} parent=5 // pred_check_branch
        %857 = sbr.rel (%p855) target = $region80
      $region79: #{tpu_custom_call.1} parent=5 // pred_region
        %s858 = ssub.s32 %s22, 2
        // Predicated region
        $region81: #{tpu_custom_call.1} parent=79 // pred_check
          %p859 = pneg %p329
        $region82: #{tpu_custom_call.1} parent=79 // pred_check_branch
          %861 = sbr.rel (%p859) target = $region84
        $region83: #{tpu_custom_call.1} parent=79 // pred_region
          %s862 = sand.u32 %s314, 1
          %s863 = scalar_lea.sflag [#allocation4], %s862
          %s864 = sand.u32 %s314, 1
          %s865 = smul.addr %s864, 8
          %s866 = scalar_lea.vmem [#allocation3], %s865
          %867 = dma.done %s863, 128
        $region84: #{tpu_custom_call.1} parent=79 // pred_fallthru
          _
      $region80: #{tpu_custom_call.1} parent=5 // pred_fallthru
        _
    $region6: #{tpu_custom_call.1} parent=1 // loop_footer
      %s26 = sadd.s32 1, %s22
    $region7: #{tpu_custom_call.1} parent=1 // loop_footer_branch
      %21 = sbr.rel target = $region3
    $region8: #{tpu_custom_call.1} parent=1 // loop_exit
      _
    %868 = vsyncpa [#allocation4], 1
    %s869 = scalar_lea.sflag [#allocation4], 1
    %870 = vsyncpa %s869, 1

</llo_original>
